<compile_context>
chip_gen: v7x
topology: tpu7x:2x2x1
jax: 0.10.0
libtpu: 0.0.40
codegen_flags: <defaults>
</compile_context>

<pallas_src>
import math

import jax
import jax.numpy as jnp
from jax.experimental import pallas as pl
from jax.experimental.pallas import tpu as pltpu

_SQRT2 = math.sqrt(2.0)
_X_CRIT = -0.75246142
# gelu(x_crit), precomputed on host (matches self.gelu(torch.tensor(x_crit)))
_CRIT_VAL = 0.5 * _X_CRIT * (1.0 + math.erf(_X_CRIT / _SQRT2))


def _gelu(x):
    # exact (erf-based) GELU, same as torch.nn.GELU() default
    return 0.5 * x * (1.0 + jax.lax.erf(x * (1.0 / _SQRT2)))


def _round_up(n, m):
    return ((n + m - 1) // m) * m


# --------------------------------------------------------------------------
# Fast path: x_error is None and operator_noise == 0.  Intervals collapse
# onto x / y, so only the main path is computed and only y leaves the kernel.
# --------------------------------------------------------------------------
def _mlp_fast_kernel(x_ref, wfc_t_ref, bfc_ref, wproj_t_ref, bproj_ref, y_ref):
    f32 = jnp.float32
    x = x_ref[...]
    h = jnp.dot(x, wfc_t_ref[...], preferred_element_type=f32) + bfc_ref[...]
    hg = _gelu(h)
    y = jnp.dot(hg.astype(wproj_t_ref.dtype), wproj_t_ref[...],
                preferred_element_type=f32) + bproj_ref[...]
    y_ref[...] = y.astype(y_ref.dtype)


# --------------------------------------------------------------------------
# Full path: main output + interval propagation in center/radius form.
#   c_fc   : center == x, so center@Wfc + bfc == h (reused); radius needs one
#            extra matmul against |Wfc|.
#   gelu   : non-monotone around x_crit -> crossing-aware min/max.
#   c_proj : lo/hi = c@Wp +/- r@|Wp| (algebraically identical to the
#            pos/neg-weight split of the PyTorch module, given x_error >= 0).
# --------------------------------------------------------------------------
def _mlp_interval_kernel(noise_ref, x_ref, xerr_ref,
                         wfc_t_ref, wfc_abs_t_ref, bfc_ref,
                         wproj_t_ref, wproj_abs_t_ref, bproj_ref,
                         y_ref, yl_ref, yu_ref):
    f32 = jnp.float32
    noise = noise_ref[0]

    x = x_ref[...]
    xe = xerr_ref[...]
    wfc_t = wfc_t_ref[...]        # (E, H)  == c_fc.weight.T
    bfc = bfc_ref[...]            # (1, H)  f32
    wproj_t = wproj_t_ref[...]    # (H, E)  == c_proj.weight.T
    bproj = bproj_ref[...]        # (1, E)  f32

    # ---- main path: c_proj(gelu(c_fc(x))) ----
    h = jnp.dot(x, wfc_t, preferred_element_type=f32) + bfc
    hg = _gelu(h)
    y = jnp.dot(hg.astype(wproj_t.dtype), wproj_t,
                preferred_element_type=f32) + bproj

    # ---- interval through c_fc (center/radius, center term reuses h) ----
    rad_fc = jnp.dot(xe, wfc_abs_t_ref[...], preferred_element_type=f32)
    lo_fc = h - rad_fc - noise
    hi_fc = h + rad_fc + noise

    # ---- interval through GELU (non-monotone around x_crit) ----
    g_lo = _gelu(lo_fc)
    g_hi = _gelu(hi_fc)
    cross = (lo_fc < _X_CRIT) & (hi_fc > _X_CRIT)
    lo_act = jnp.where(cross, f32(_CRIT_VAL), jnp.minimum(g_lo, g_hi)) - noise
    hi_act = jnp.maximum(g_lo, g_hi) + noise

    # ---- interval through c_proj (center/radius) ----
    c_act = 0.5 * (hi_act + lo_act)
    r_act = 0.5 * (hi_act - lo_act)
    c_out = jnp.dot(c_act.astype(wproj_t.dtype), wproj_t,
                    preferred_element_type=f32) + bproj
    r_out = jnp.dot(r_act.astype(wproj_abs_t_ref.dtype), wproj_abs_t_ref[...],
                    preferred_element_type=f32)

    y_ref[...] = y.astype(y_ref.dtype)
    yl_ref[...] = (c_out - r_out - noise).astype(yl_ref.dtype)
    yu_ref[...] = (c_out + r_out + noise).astype(yu_ref.dtype)


def _fit_tile_n(tile_n, N, E, H, in_itemsize, interval):
    """Clamp the row tile to a multiple of 8 that fits a VMEM budget."""
    tile_n = max(8, min(int(tile_n), _round_up(N, 8)))
    tile_n = _round_up(tile_n, 8)
    n_weights = 4 if interval else 2          # W (+ |W|) for fc and proj
    weight_bytes = 2 * n_weights * E * H * in_itemsize   # double-buffered
    bias_bytes = 2 * 2 * (E + H) * 4

    def row_bytes(tn):
        n_row_streams = 5 if interval else 2  # HBM-tiled row arrays (2 bufs)
        n_hidden_tmp = 6 if interval else 2   # f32 (tn, H) intermediates
        return (2 * n_row_streams * tn * E * 4 + n_hidden_tmp * tn * H * 4)

    budget = 56 * 1024 * 1024
    while tile_n > 8 and weight_bytes + bias_bytes + row_bytes(tile_n) > budget:
        tile_n = max(8, _round_up(tile_n // 2, 8))
    return tile_n


def mlp_forward(x, params, x_error=None, operator_noise=0.0,
                tile_n=256, compute_dtype=jnp.float32):
    """Pallas MLP forward.

    Returns (y, x_lower, x_upper, y_lower, y_upper); the first three match the
    PyTorch module's return tuple, the last two are what the module stores in
    layer_info.  Use compute_dtype=jnp.bfloat16 for extra MXU throughput on
    v6e/v7x (accumulation stays f32).
    """
    B, T, E = x.shape
    N = B * T
    H = params["w_fc"].shape[0]

    noise_is_static_zero = (not isinstance(operator_noise, jax.Array)
                            and float(operator_noise) == 0.0)
    interval_path = not (x_error is None and noise_is_static_zero)

    in_itemsize = jnp.dtype(compute_dtype).itemsize
    tile_n = _fit_tile_n(tile_n, N, E, H, in_itemsize, interval_path)
    n_pad = _round_up(N, tile_n)
    grid = (n_pad // tile_n,)

    x2 = x.reshape(N, E).astype(compute_dtype)
    if n_pad != N:
        x2 = jnp.pad(x2, ((0, n_pad - N), (0, 0)))

    wfc_t = params["w_fc"].T.astype(compute_dtype)       # (E, H)
    bfc = params["b_fc"].reshape(1, H).astype(jnp.float32)
    wproj_t = params["w_proj"].T.astype(compute_dtype)   # (H, E)
    bproj = params["b_proj"].reshape(1, E).astype(jnp.float32)

    row_spec = pl.BlockSpec((tile_n, E), lambda i: (i, 0))
    wfc_spec = pl.BlockSpec((E, H), lambda i: (0, 0))
    bfc_spec = pl.BlockSpec((1, H), lambda i: (0, 0))
    wproj_spec = pl.BlockSpec((H, E), lambda i: (0, 0))
    bproj_spec = pl.BlockSpec((1, E), lambda i: (0, 0))

    compiler_params = pltpu.CompilerParams(
        dimension_semantics=("parallel",),
        vmem_limit_bytes=64 * 1024 * 1024,
    )

    # ---------------- fast path ----------------
    if not interval_path:
        y_pad = pl.pallas_call(
            _mlp_fast_kernel,
            grid=grid,
            in_specs=[row_spec, wfc_spec, bfc_spec, wproj_spec, bproj_spec],
            out_specs=row_spec,
            out_shape=jax.ShapeDtypeStruct((n_pad, E), jnp.float32),
            compiler_params=compiler_params,
        )(x2, wfc_t, bfc, wproj_t, bproj)
        y = y_pad[:N].reshape(B, T, E)
        # With x_error=None and operator_noise=0 the intervals collapse.
        return y, x, x, y, y

    # ---------------- full interval path ----------------
    if x_error is None:
        xerr2 = jnp.zeros((n_pad, E), compute_dtype)
        x_lower = x
        x_upper = x
    else:
        # NOTE: center/radius form assumes x_error >= 0 elementwise (as the
        # module's error-interval semantics imply).
        xerr2 = x_error.reshape(N, E).astype(compute_dtype)
        if n_pad != N:
            xerr2 = jnp.pad(xerr2, ((0, n_pad - N), (0, 0)))
        x_lower = x - x_error
        x_upper = x + x_error

    noise_arr = jnp.asarray(operator_noise, jnp.float32).reshape((1,))

    y_pad, yl_pad, yu_pad = pl.pallas_call(
        _mlp_interval_kernel,
        grid=grid,
        in_specs=[
            pl.BlockSpec(memory_space=pltpu.MemorySpace.SMEM),  # operator_noise
            row_spec,                                           # x
            row_spec,                                           # x_error
            wfc_spec,                                           # c_fc.weight.T
            wfc_spec,                                           # |c_fc.weight|.T
            bfc_spec,                                           # c_fc.bias
            wproj_spec,                                         # c_proj.weight.T
            wproj_spec,                                         # |c_proj.weight|.T
            bproj_spec,                                         # c_proj.bias
        ],
        out_specs=[row_spec] * 3,
        out_shape=[jax.ShapeDtypeStruct((n_pad, E), jnp.float32)] * 3,
        compiler_params=compiler_params,
    )(noise_arr, x2, xerr2,
      wfc_t, jnp.abs(wfc_t), bfc,
      wproj_t, jnp.abs(wproj_t), bproj)

    y = y_pad[:N].reshape(B, T, E)
    yl = yl_pad[:N].reshape(B, T, E)
    yu = yu_pad[:N].reshape(B, T, E)
    return y, x_lower, x_upper, yl, yu


def _init_params(key, n_embd):
    """Deterministic nn.Linear-style init (uniform(-1/sqrt(fan_in), +))."""
    h = 4 * n_embd
    k1, k2, k3, k4 = jax.random.split(key, 4)
    kf = 1.0 / math.sqrt(n_embd)
    kp = 1.0 / math.sqrt(h)
    return {
        "w_fc": jax.random.uniform(k1, (h, n_embd), jnp.float32, -kf, kf),
        "b_fc": jax.random.uniform(k2, (h,), jnp.float32, -kf, kf),
        "w_proj": jax.random.uniform(k3, (n_embd, h), jnp.float32, -kp, kp),
        "b_proj": jax.random.uniform(k4, (n_embd,), jnp.float32, -kp, kp),
    }


def _ref_forward(x, params, x_error=None, noise=0.0):
    """Plain-JAX reference mirroring the PyTorch module (pos/neg weight form)."""
    if x_error is None:
        xl, xu = x, x
    else:
        xl, xu = x - x_error, x + x_error
    Wfc, bfc = params["w_fc"], params["b_fc"]
    Wpj, bpj = params["w_proj"], params["b_proj"]
    h = x @ Wfc.T + bfc
    g = _gelu(h)
    y = g @ Wpj.T + bpj
    Wp, Wn = jnp.maximum(Wfc, 0.0), jnp.minimum(Wfc, 0.0)
    lo_fc = xl @ Wp.T + xu @ Wn.T - noise + bfc
    hi_fc = xu @ Wp.T + xl @ Wn.T + noise + bfc
    g_lo, g_hi = _gelu(lo_fc), _gelu(hi_fc)
    cross = (lo_fc < _X_CRIT) & (hi_fc > _X_CRIT)
    lo_act = jnp.where(cross, _CRIT_VAL, jnp.minimum(g_lo, g_hi)) - noise
    hi_act = jnp.maximum(g_lo, g_hi) + noise
    Pp, Pn = jnp.maximum(Wpj, 0.0), jnp.minimum(Wpj, 0.0)
    yl = lo_act @ Pp.T + hi_act @ Pn.T - noise + bpj
    yu = hi_act @ Pp.T + lo_act @ Pn.T + noise + bpj
    return y, xl, xu, yl, yu


if __name__ == "__main__":
    B, T, n_embd = 2, 8, 32
    key = jax.random.PRNGKey(0)
    kx, kp, ke = jax.random.split(key, 3)
    x = jax.random.normal(kx, (B, T, n_embd), jnp.float32)
    params = _init_params(kp, n_embd)

    # ---- 1) fast path: x_error=None, operator_noise=0 ----
    y, xl, xu, yl, yu = jax.block_until_ready(mlp_forward(x, params))
    y_r, *_ = _ref_forward(x, params)
    assert jnp.max(jnp.abs(y - y_r)) < 1e-4
    assert jnp.max(jnp.abs(xl - x)) == 0.0 and jnp.max(jnp.abs(xu - x)) == 0.0
    assert jnp.max(jnp.abs(yl - y)) == 0.0 and jnp.max(jnp.abs(yu - y)) == 0.0

    # ---- 2) full interval path with x_error + operator_noise, and a row
    #         count (B*T = 15) that exercises the pad/slice remainder path ----
    B2, T2 = 3, 5
    kx2, ke2 = jax.random.split(ke)
    x2 = jax.random.normal(kx2, (B2, T2, n_embd), jnp.float32)
    x_err = 0.05 * jnp.abs(jax.random.normal(ke2, (B2, T2, n_embd), jnp.float32))
    noise = 0.01
    y, xl, xu, yl, yu = jax.block_until_ready(
        mlp_forward(x2, params, x_error=x_err, operator_noise=noise))
    y_r, xl_r, xu_r, yl_r, yu_r = _ref_forward(x2, params, x_err, noise)
    assert jnp.max(jnp.abs(y - y_r)) < 1e-4
    assert jnp.max(jnp.abs(xl - xl_r)) < 1e-6
    assert jnp.max(jnp.abs(xu - xu_r)) < 1e-6
    assert jnp.max(jnp.abs(yl - yl_r)) < 1e-3
    assert jnp.max(jnp.abs(yu - yu_r)) < 1e-3

    print("KERNEL_OK")
</pallas_src>

<mosaic_0001>
module attributes {stable_mosaic.version = 11 : i64} {
  func.func @_mlp_fast_kernel(%arg0: i32, %arg1: memref<16x32xf32, #tpu.memory_space<vmem>>, %arg2: memref<32x128xf32, #tpu.memory_space<vmem>>, %arg3: memref<1x128xf32, #tpu.memory_space<vmem>>, %arg4: memref<128x32xf32, #tpu.memory_space<vmem>>, %arg5: memref<1x32xf32, #tpu.memory_space<vmem>>, %arg6: memref<16x32xf32, #tpu.memory_space<vmem>>) attributes {dimension_semantics = [#tpu.dimension_semantics<parallel>], iteration_bounds = array<i64: 1>, scalar_prefetch = 0 : i64, scratch_operands = 0 : i64, tpu.core_type = #tpu.core_type<tc>, window_params = [{transform_indices = @transform_0, window_bounds = array<i64: 16, 32>}, {pipeline_mode = #tpu.pipeline_mode<synchronous>, transform_indices = @transform_1, window_bounds = array<i64: 32, 128>}, {pipeline_mode = #tpu.pipeline_mode<synchronous>, transform_indices = @transform_2, window_bounds = array<i64: 1, 128>}, {pipeline_mode = #tpu.pipeline_mode<synchronous>, transform_indices = @transform_3, window_bounds = array<i64: 128, 32>}, {pipeline_mode = #tpu.pipeline_mode<synchronous>, transform_indices = @transform_4, window_bounds = array<i64: 1, 32>}, {transform_indices = @transform_5, window_bounds = array<i64: 16, 32>}]} {
    %c0 = arith.constant 0 : index
    %c0_0 = arith.constant 0 : index
    %0 = vector.load %arg1[%c0, %c0_0] : memref<16x32xf32, #tpu.memory_space<vmem>>, vector<16x32xf32>
    %c0_1 = arith.constant 0 : index
    %c0_2 = arith.constant 0 : index
    %1 = vector.load %arg2[%c0_1, %c0_2] : memref<32x128xf32, #tpu.memory_space<vmem>>, vector<32x128xf32>
    %cst = arith.constant dense<0.000000e+00> : vector<16x128xf32>
    %2 = tpu.matmul %0, %1, %cst {dimension_numbers = #tpu.dot_dimension_numbers<[1], [0], [0], [1], [0, 0, 1, 1], [], []>} : vector<16x32xf32>, vector<32x128xf32>, vector<16x128xf32> -> vector<16x128xf32>
    %c0_3 = arith.constant 0 : index
    %c0_4 = arith.constant 0 : index
    %3 = vector.load %arg3[%c0_3, %c0_4] : memref<1x128xf32, #tpu.memory_space<vmem>>, vector<1x128xf32>
    %4 = vector.broadcast %3 : vector<1x128xf32> to vector<16x128xf32>
    %5 = arith.addf %2, %4 : vector<16x128xf32>
    %cst_5 = arith.constant 5.000000e-01 : f32
    %6 = vector.broadcast %cst_5 : f32 to vector<16x128xf32>
    %7 = arith.mulf %6, %5 : vector<16x128xf32>
    %cst_6 = arith.constant 0.707106769 : f32
    %8 = vector.broadcast %cst_6 : f32 to vector<16x128xf32>
    %9 = arith.mulf %5, %8 : vector<16x128xf32>
    %10 = math.erf %9 : vector<16x128xf32>
    %cst_7 = arith.constant 1.000000e+00 : f32
    %11 = vector.broadcast %cst_7 : f32 to vector<16x128xf32>
    %12 = arith.addf %11, %10 : vector<16x128xf32>
    %13 = arith.mulf %7, %12 : vector<16x128xf32>
    %c0_8 = arith.constant 0 : index
    %c0_9 = arith.constant 0 : index
    %14 = vector.load %arg4[%c0_8, %c0_9] : memref<128x32xf32, #tpu.memory_space<vmem>>, vector<128x32xf32>
    %cst_10 = arith.constant dense<0.000000e+00> : vector<16x32xf32>
    %15 = tpu.matmul %13, %14, %cst_10 {dimension_numbers = #tpu.dot_dimension_numbers<[1], [0], [0], [1], [0, 0, 1, 1], [], []>} : vector<16x128xf32>, vector<128x32xf32>, vector<16x32xf32> -> vector<16x32xf32>
    %c0_11 = arith.constant 0 : index
    %c0_12 = arith.constant 0 : index
    %16 = vector.load %arg5[%c0_11, %c0_12] : memref<1x32xf32, #tpu.memory_space<vmem>>, vector<1x32xf32>
    %17 = vector.broadcast %16 : vector<1x32xf32> to vector<16x32xf32>
    %18 = arith.addf %15, %17 : vector<16x32xf32>
    %c0_13 = arith.constant 0 : index
    %c0_14 = arith.constant 0 : index
    %19 = vector.load %arg6[%c0_13, %c0_14] : memref<16x32xf32, #tpu.memory_space<vmem>>, vector<16x32xf32>
    tpu.vector_store %arg6[%c0_13, %c0_14], %18 {strides = array<i32>} : memref<16x32xf32, #tpu.memory_space<vmem>>, vector<16x32xf32>,
    return
  }
  func.func @transform_0(%arg0: i32) -> (i32, i32) {
    %c0_i32 = arith.constant 0 : i32
    %c0_i32_0 = arith.constant 0 : i32
    return %arg0, %c0_i32 : i32, i32
  }
  func.func @transform_1(%arg0: i32) -> (i32, i32) {
    %c0_i32 = arith.constant 0 : i32
    %c0_i32_0 = arith.constant 0 : i32
    %c0_i32_1 = arith.constant 0 : i32
    return %c0_i32, %c0_i32_0 : i32, i32
  }
  func.func @transform_2(%arg0: i32) -> (i32, i32) {
    %c0_i32 = arith.constant 0 : i32
    %c0_i32_0 = arith.constant 0 : i32
    %c0_i32_1 = arith.constant 0 : i32
    return %c0_i32, %c0_i32_0 : i32, i32
  }
  func.func @transform_3(%arg0: i32) -> (i32, i32) {
    %c0_i32 = arith.constant 0 : i32
    %c0_i32_0 = arith.constant 0 : i32
    %c0_i32_1 = arith.constant 0 : i32
    return %c0_i32, %c0_i32_0 : i32, i32
  }
  func.func @transform_4(%arg0: i32) -> (i32, i32) {
    %c0_i32 = arith.constant 0 : i32
    %c0_i32_0 = arith.constant 0 : i32
    %c0_i32_1 = arith.constant 0 : i32
    return %c0_i32, %c0_i32_0 : i32, i32
  }
  func.func @transform_5(%arg0: i32) -> (i32, i32) {
    %c0_i32 = arith.constant 0 : i32
    %c0_i32_0 = arith.constant 0 : i32
    return %arg0, %c0_i32 : i32, i32
  }
}

</mosaic_0001>

<llo_original>
// kernel: tpu_custom_call.1
$region0: #{tpu_custom_call.1}
  #allocation0 [shape = 'u32[]', space=smem, size = 0x4, offset = 0x4, fixed_abs, tag = 'smem constant byte address 0x4 - core index']
  #allocation1 [shape = 'u32[144,128]{1,0:T(1,128)}', space=vmem, size = 0x12000, scoped, tag = 'internal scratch']
  %s0 = inlined_call_operand.hbm [shape: f32[16,32], index: 0, kind: input, shape index: {}]
  %s1 = inlined_call_operand.hbm [shape: f32[32,128], index: 1, kind: input, shape index: {}]
  %s2 = inlined_call_operand.hbm [shape: f32[1,128], index: 2, kind: input, shape index: {}]
  %s3 = inlined_call_operand.hbm [shape: f32[128,32], index: 3, kind: input, shape index: {}]
  %s4 = inlined_call_operand.hbm [shape: f32[1,32], index: 4, kind: input, shape index: {}]
  %s5 = inlined_call_operand.hbm [shape: f32[16,32], index: 5, kind: output, shape index: {}]
  %s6 = sld [smem:[#allocation0]]
  $region50: #{tpu_custom_call.1} parent=0
    _
  %s8 = ssub.s32 1, %s6
  %s9 = scalar_select 0, %s8, %s6
  $region1: #{tpu_custom_call.1} parent=0
    #allocation2 [shape = 'u8[8192]{0}', space=vmem, size = 0x2000, scoped, tag = 'input window, operand 0, single buffered']
    #allocation3 [shape = 's32[1]{0}', space=sflag, size = 0x4, scoped, tag = 'scoped memory for tpu_custom_call.1']
    #allocation4 [shape = 's32[1]{0}', space=sflag, size = 0x4, scoped, tag = 'scoped memory for tpu_custom_call.1']
    #allocation5 [shape = 'u8[16384]{0}', space=vmem, size = 0x4000, scoped, tag = 'input window, operand 1, single buffered']
    #allocation6 [shape = 's32[1]{0}', space=sflag, size = 0x4, scoped, tag = 'scoped memory for tpu_custom_call.1']
    #allocation7 [shape = 'u8[512]{0}', space=vmem, size = 0x400, scoped, tag = 'input window, operand 2, single buffered']
    #allocation8 [shape = 'u8[65536]{0}', space=vmem, size = 0x10000, scoped, tag = 'input window, operand 3, single buffered']
    #allocation9 [shape = 's32[1]{0}', space=sflag, size = 0x4, scoped, tag = 'scoped memory for tpu_custom_call.1']
    #allocation10 [shape = 'u8[512]{0}', space=vmem, size = 0x400, scoped, tag = 'input window, operand 4, single buffered']
    #allocation11 [shape = 'u8[8192]{0}', space=vmem, size = 0x2000, scoped, tag = 'output window, operand 0, single buffered']
    %10 = vsyncpa [#allocation3], 0
    %11 = vsyncpa [#allocation6], 0
    %12 = vsyncpa [#allocation9], 0
    %13 = vsyncpa [#allocation4], 0
    // Predicated region
    $region2: #{tpu_custom_call.1} parent=1 // pred_check
      _
    $region3: #{tpu_custom_call.1} parent=1 // pred_check_branch
      %15 = sbr.rel (0) target = $region5
    $region4: #{tpu_custom_call.1} parent=1 // pred_region
      %s17 = ssub.s32 256, 256
      %18 = vsyncadd [#allocation3], %s17
      %s19 = sshll.u32 [#allocation2], 4
      %s20 = int_to_ptr.vmem [resolvable:$true] %s19
      %25 = dma.hbm_to_vmem [thread:$0]  %s0, 256, %s20, [#allocation3], 128, 128, 8
    $region5: #{tpu_custom_call.1} parent=1 // pred_fallthru
      _
    // Predicated region
    $region6: #{tpu_custom_call.1} parent=1 // pred_check
      _
    $region7: #{tpu_custom_call.1} parent=1 // pred_check_branch
      %27 = sbr.rel (0) target = $region9
    $region8: #{tpu_custom_call.1} parent=1 // pred_region
      %s29 = ssub.s32 512, 512
      %30 = vsyncadd [#allocation6], %s29
      %s31 = sshll.u32 [#allocation5], 4
      %s32 = int_to_ptr.vmem [resolvable:$true] %s31
      %37 = dma.hbm_to_vmem [thread:$0]  %s1, 512, %s32, [#allocation6], 128, 128, 8
    $region9: #{tpu_custom_call.1} parent=1 // pred_fallthru
      _
    // Predicated region
    $region10: #{tpu_custom_call.1} parent=1 // pred_check
      _
    $region11: #{tpu_custom_call.1} parent=1 // pred_check_branch
      %39 = sbr.rel (0) target = $region13
    $region12: #{tpu_custom_call.1} parent=1 // pred_region
      %s41 = ssub.s32 16, 16
      %42 = vsyncadd [#allocation6], %s41
      %s44 = sshll.u32 [#allocation7], 4
      %s45 = int_to_ptr.vmem [resolvable:$true] %s44
      %47 = dma.hbm_to_vmem [thread:$0]  %s2, 16, %s45, [#allocation6]
    $region13: #{tpu_custom_call.1} parent=1 // pred_fallthru
      _
    // Predicated region
    $region14: #{tpu_custom_call.1} parent=1 // pred_check
      _
    $region15: #{tpu_custom_call.1} parent=1 // pred_check_branch
      %49 = sbr.rel (0) target = $region17
    $region16: #{tpu_custom_call.1} parent=1 // pred_region
      %s51 = ssub.s32 2048, 2048
      %52 = vsyncadd [#allocation9], %s51
      %s53 = sshll.u32 [#allocation8], 4
      %s54 = int_to_ptr.vmem [resolvable:$true] %s53
      %59 = dma.hbm_to_vmem [thread:$0]  %s3, 2048, %s54, [#allocation9], 128, 128, 8
    $region17: #{tpu_custom_call.1} parent=1 // pred_fallthru
      _
    // Predicated region
    $region18: #{tpu_custom_call.1} parent=1 // pred_check
      _
    $region19: #{tpu_custom_call.1} parent=1 // pred_check_branch
      %61 = sbr.rel (0) target = $region21
    $region20: #{tpu_custom_call.1} parent=1 // pred_region
      %s63 = ssub.s32 16, 16
      %64 = vsyncadd [#allocation9], %s63
      %s66 = sshll.u32 [#allocation10], 4
      %s67 = int_to_ptr.vmem [resolvable:$true] %s66
      %69 = dma.hbm_to_vmem [thread:$0]  %s4, 16, %s67, [#allocation9]
    $region21: #{tpu_custom_call.1} parent=1 // pred_fallthru
      _
    // Predicated region
    $region22: #{tpu_custom_call.1} parent=1 // pred_check
      _
    $region23: #{tpu_custom_call.1} parent=1 // pred_check_branch
      %71 = sbr.rel (0) target = $region25
    $region24: #{tpu_custom_call.1} parent=1 // pred_region
      %72 = dma.done [#allocation3], 256
    $region25: #{tpu_custom_call.1} parent=1 // pred_fallthru
      _
    // Predicated region
    $region26: #{tpu_custom_call.1} parent=1 // pred_check
      _
    $region27: #{tpu_custom_call.1} parent=1 // pred_check_branch
      %74 = sbr.rel (0) target = $region29
    $region28: #{tpu_custom_call.1} parent=1 // pred_region
      %75 = dma.done [#allocation6], 512
    $region29: #{tpu_custom_call.1} parent=1 // pred_fallthru
      _
    // Predicated region
    $region30: #{tpu_custom_call.1} parent=1 // pred_check
      _
    $region31: #{tpu_custom_call.1} parent=1 // pred_check_branch
      %77 = sbr.rel (0) target = $region33
    $region32: #{tpu_custom_call.1} parent=1 // pred_region
      %78 = dma.done [#allocation6], 16
    $region33: #{tpu_custom_call.1} parent=1 // pred_fallthru
      _
    // Predicated region
    $region34: #{tpu_custom_call.1} parent=1 // pred_check
      _
    $region35: #{tpu_custom_call.1} parent=1 // pred_check_branch
      %80 = sbr.rel (0) target = $region37
    $region36: #{tpu_custom_call.1} parent=1 // pred_region
      %81 = dma.done [#allocation9], 2048
    $region37: #{tpu_custom_call.1} parent=1 // pred_fallthru
      _
    // Predicated region
    $region38: #{tpu_custom_call.1} parent=1 // pred_check
      _
    $region39: #{tpu_custom_call.1} parent=1 // pred_check_branch
      %83 = sbr.rel (0) target = $region41
    $region40: #{tpu_custom_call.1} parent=1 // pred_region
      %84 = dma.done [#allocation9], 16
    $region41: #{tpu_custom_call.1} parent=1 // pred_fallthru
      _
    %v85 = vld [vmem:[#allocation2] sm:$0xff]
    %v86 = vld [vmem:[#allocation2 + $0x8] sm:$0xff]
    %v87 = vld [vmem:[#allocation5] sm:$0xff]
    %v88 = vld [vmem:[#allocation5 + $0x8] sm:$0xff]
    %v89 = vld [vmem:[#allocation5 + $0x10] sm:$0xff]
    %v90 = vld [vmem:[#allocation5 + $0x18] sm:$0xff]
    %v91 = vld [vmem:[#allocation7] sm:$0x1]
    %v93 = vlaneseq
    %v94 = vshrl.u32 %v93, 7
    %v95 = vsub.s32 0, %v94
    %v96 = vrot.slane %v91, %v95
    %vm98 = vcmask 261120
    %v100 = vsel %vm98, %v85, 0
    %v103 = vsel %vm98, %v86, 0
    %105 = vmatprep.subr.mxu0 0.0
    %106 = vmatpush1.msra.mxu0 %v87
    %107 = vmatprep.subr.mxu0 0.0
    %108 = vmatpush1.msra.mxu0 %v88
    %109 = vmatprep.subr.mxu0 0.0
    %110 = vmatpush1.msra.mxu0 %v89
    %111 = vmatprep.subr.mxu0 0.0
    %112 = vmatpush1.msra.mxu0 %v90
    %113 = vmatprep.subr.mxu0 0.0
    %114 = vmatpush1.msra.mxu0 0.0
    %115 = vmatprep.subr.mxu0 0.0
    %116 = vmatpush1.msra.mxu0 0.0
    %117 = vmatprep.subr.mxu0 0.0
    %118 = vmatpush1.msra.mxu0 0.0
    %119 = vmatprep.subr.mxu0 0.0
    %120 = vmatpush1.msra.mxu0 0.0
    %121 = vmatprep.subr.mxu0 0.0
    %122 = vmatpush1.msra.mxu0 0.0
    %123 = vmatprep.subr.mxu0 0.0
    %124 = vmatpush1.msra.mxu0 0.0
    %125 = vmatprep.subr.mxu0 0.0
    %126 = vmatpush1.msra.mxu0 0.0
    %127 = vmatprep.subr.mxu0 0.0
    %128 = vmatpush1.msra.mxu0 0.0
    %129 = vmatprep.subr.mxu0 0.0
    %130 = vmatpush1.msra.mxu0 0.0
    %131 = vmatprep.subr.mxu0 0.0
    %132 = vmatpush1.msra.mxu0 0.0
    %133 = vmatprep.subr.mxu0 0.0
    %134 = vmatpush1.msra.mxu0 0.0
    %135 = vmatprep.subr.mxu0 0.0
    %136 = vmatpush1.msra.mxu0 0.0
    %137 = vmatprep.subr.mxu0 0.0
    %138 = vmatpush1.msra.mxu0 0.0
    %139 = vmatprep.subr.mxu0 0.0
    %140 = vmatpush1.msra.mxu0 0.0
    %141 = vmatprep.subr.mxu0 0.0
    %142 = vmatpush1.msra.mxu0 0.0
    %143 = vmatprep.subr.mxu0 0.0
    %144 = vmatpush1.msra.mxu0 0.0
    %145 = vmatprep.subr.mxu0 0.0
    %146 = vmatpush1.msra.mxu0 0.0
    %147 = vmatprep.subr.mxu0 0.0
    %148 = vmatpush1.msra.mxu0 0.0
    %149 = vmatprep.subr.mxu0 0.0
    %150 = vmatpush1.msra.mxu0 0.0
    %151 = vmatprep.subr.mxu0 0.0
    %152 = vmatpush1.msra.mxu0 0.0
    %153 = vmatprep.subr.mxu0 0.0
    %154 = vmatpush1.msra.mxu0 0.0
    %155 = vmatprep.subr.mxu0 0.0
    %156 = vmatpush1.msra.mxu0 0.0
    %157 = vmatprep.subr.mxu0 0.0
    %158 = vmatpush1.msra.mxu0 0.0
    %159 = vmatprep.subr.mxu0 0.0
    %160 = vmatpush1.msra.mxu0 0.0
    %161 = vmatprep.subr.mxu0 0.0
    %162 = vmatpush1.msra.mxu0 0.0
    %163 = vmatprep.subr.mxu0 0.0
    %164 = vmatpush1.msra.mxu0 0.0
    %165 = vmatprep.subr.mxu0 0.0
    %166 = vmatpush1.msra.mxu0 0.0
    %167 = vmatprep.subr.mxu0 0.0
    %168 = vmatpush1.msra.mxu0 0.0
    %169 = vmatprep.mubr.f32.mxu0 0.0
    %170 = vmatmul.mubr.f32.gmra.mrb[0].mxu0 %v100
    %v171 = vpop.f32.mrb[0].mxu0
    %v172 = vadd.f32 %v96, %v171
    %v173 = vpop.f32.mrb[0].mxu0
    %174 = vmatprep.mubr.f32.mxu0 0.0
    %175 = vmatmul.mubr.f32.gmra.mrb[0].mxu0 %v103
    %v176 = vpop.f32.mrb[0].mxu0
    %v177 = vadd.f32 %v96, %v176
    %v178 = vpop.f32.mrb[0].mxu0
    %179 = vdwg.mxu0
    %v180 = vmul.f32 %v172, 0.5
    %v181 = vmul.f32 %v177, 0.5
    %v182 = vmul.f32 %v172, 0.70710677
    %v183 = vmul.f32 %v177, 0.70710677
    %v184 = verf.f32.pop %v182
    %v185 = verf.f32.pop %v183
    %v186 = vadd.f32 %v184, 1.0
    %v187 = vadd.f32 %v185, 1.0
    %v188 = vmul.f32 %v180, %v186
    %v189 = vmul.f32 %v181, %v187
    %v190 = vld [vmem:[#allocation8] sm:$0xff]
    %v191 = vld [vmem:[#allocation8 + $0x8] sm:$0xff]
    %v192 = vld [vmem:[#allocation8 + $0x10] sm:$0xff]
    %v193 = vld [vmem:[#allocation8 + $0x18] sm:$0xff]
    %v194 = vld [vmem:[#allocation8 + $0x20] sm:$0xff]
    %v195 = vld [vmem:[#allocation8 + $0x28] sm:$0xff]
    %v196 = vld [vmem:[#allocation8 + $0x30] sm:$0xff]
    %v197 = vld [vmem:[#allocation8 + $0x38] sm:$0xff]
    %v198 = vld [vmem:[#allocation8 + $0x40] sm:$0xff]
    %v199 = vld [vmem:[#allocation8 + $0x48] sm:$0xff]
    %v200 = vld [vmem:[#allocation8 + $0x50] sm:$0xff]
    %v201 = vld [vmem:[#allocation8 + $0x58] sm:$0xff]
    %v202 = vld [vmem:[#allocation8 + $0x60] sm:$0xff]
    %v203 = vld [vmem:[#allocation8 + $0x68] sm:$0xff]
    %v204 = vld [vmem:[#allocation8 + $0x70] sm:$0xff]
    %v205 = vld [vmem:[#allocation8 + $0x78] sm:$0xff]
    %v206 = vld [vmem:[#allocation10] sm:$0x1]
    %v208 = vlaneseq
    %v209 = vshrl.u32 %v208, 7
    %v210 = vsub.s32 0, %v209
    %v211 = vrot.slane %v206, %v210
    %213 = vmatprep.subr.mxu0 0.0
    %214 = vmatpush1.msra.mxu0 %v190
    %215 = vmatprep.subr.mxu0 0.0
    %216 = vmatpush1.msra.mxu0 %v191
    %217 = vmatprep.subr.mxu0 0.0
    %218 = vmatpush1.msra.mxu0 %v192
    %219 = vmatprep.subr.mxu0 0.0
    %220 = vmatpush1.msra.mxu0 %v193
    %221 = vmatprep.subr.mxu0 0.0
    %222 = vmatpush1.msra.mxu0 %v194
    %223 = vmatprep.subr.mxu0 0.0
    %224 = vmatpush1.msra.mxu0 %v195
    %225 = vmatprep.subr.mxu0 0.0
    %226 = vmatpush1.msra.mxu0 %v196
    %227 = vmatprep.subr.mxu0 0.0
    %228 = vmatpush1.msra.mxu0 %v197
    %229 = vmatprep.subr.mxu0 0.0
    %230 = vmatpush1.msra.mxu0 %v198
    %231 = vmatprep.subr.mxu0 0.0
    %232 = vmatpush1.msra.mxu0 %v199
    %233 = vmatprep.subr.mxu0 0.0
    %234 = vmatpush1.msra.mxu0 %v200
    %235 = vmatprep.subr.mxu0 0.0
    %236 = vmatpush1.msra.mxu0 %v201
    %237 = vmatprep.subr.mxu0 0.0
    %238 = vmatpush1.msra.mxu0 %v202
    %239 = vmatprep.subr.mxu0 0.0
    %240 = vmatpush1.msra.mxu0 %v203
    %241 = vmatprep.subr.mxu0 0.0
    %242 = vmatpush1.msra.mxu0 %v204
    %243 = vmatprep.subr.mxu0 0.0
    %244 = vmatpush1.msra.mxu0 %v205
    %245 = vmatprep.subr.mxu0 0.0
    %246 = vmatpush1.msra.mxu0 0.0
    %247 = vmatprep.subr.mxu0 0.0
    %248 = vmatpush1.msra.mxu0 0.0
    %249 = vmatprep.subr.mxu0 0.0
    %250 = vmatpush1.msra.mxu0 0.0
    %251 = vmatprep.subr.mxu0 0.0
    %252 = vmatpush1.msra.mxu0 0.0
    %253 = vmatprep.subr.mxu0 0.0
    %254 = vmatpush1.msra.mxu0 0.0
    %255 = vmatprep.subr.mxu0 0.0
    %256 = vmatpush1.msra.mxu0 0.0
    %257 = vmatprep.subr.mxu0 0.0
    %258 = vmatpush1.msra.mxu0 0.0
    %259 = vmatprep.subr.mxu0 0.0
    %260 = vmatpush1.msra.mxu0 0.0
    %261 = vmatprep.subr.mxu0 0.0
    %262 = vmatpush1.msra.mxu0 0.0
    %263 = vmatprep.subr.mxu0 0.0
    %264 = vmatpush1.msra.mxu0 0.0
    %265 = vmatprep.subr.mxu0 0.0
    %266 = vmatpush1.msra.mxu0 0.0
    %267 = vmatprep.subr.mxu0 0.0
    %268 = vmatpush1.msra.mxu0 0.0
    %269 = vmatprep.subr.mxu0 0.0
    %270 = vmatpush1.msra.mxu0 0.0
    %271 = vmatprep.subr.mxu0 0.0
    %272 = vmatpush1.msra.mxu0 0.0
    %273 = vmatprep.subr.mxu0 0.0
    %274 = vmatpush1.msra.mxu0 0.0
    %275 = vmatprep.subr.mxu0 0.0
    %276 = vmatpush1.msra.mxu0 0.0
    %277 = vmatprep.mubr.f32.mxu0 0.0
    %278 = vmatmul.mubr.f32.gmra.mrb[0].mxu0 %v188
    %v279 = vpop.f32.mrb[0].mxu0
    %v280 = vadd.f32 %v211, %v279
    %v281 = vpop.f32.mrb[0].mxu0
    %282 = vmatprep.mubr.f32.mxu0 0.0
    %283 = vmatmul.mubr.f32.gmra.mrb[0].mxu0 %v189
    %v284 = vpop.f32.mrb[0].mxu0
    %v285 = vadd.f32 %v211, %v284
    %v286 = vpop.f32.mrb[0].mxu0
    %287 = vdwg.mxu0
    %288 = vst.msk [vmem:[#allocation11] sm:$0xff] %vm98, %v280
    %289 = vst.msk [vmem:[#allocation11 + $0x8] sm:$0xff] %vm98, %v285
    // Predicated region
    $region42: #{tpu_custom_call.1} parent=1 // pred_check
      _
    $region43: #{tpu_custom_call.1} parent=1 // pred_check_branch
      %291 = sbr.rel (0) target = $region45
    $region44: #{tpu_custom_call.1} parent=1 // pred_region
      %s293 = ssub.s32 256, 256
      %294 = vsyncadd [#allocation4], %s293
      %s295 = sshll.u32 [#allocation11], 4
      %s296 = int_to_ptr.vmem [resolvable:$true] %s295
      %301 = dma.vmem_to_hbm [thread:$0]  %s296, 256, %s5, [#allocation4], 128, 128, 8
    $region45: #{tpu_custom_call.1} parent=1 // pred_fallthru
      _
    // Predicated region
    $region46: #{tpu_custom_call.1} parent=1 // pred_check
      _
    $region47: #{tpu_custom_call.1} parent=1 // pred_check_branch
      %303 = sbr.rel (0) target = $region49
    $region48: #{tpu_custom_call.1} parent=1 // pred_region
      %304 = dma.done [#allocation4], 256
    $region49: #{tpu_custom_call.1} parent=1 // pred_fallthru
      _
    %305 = vsyncpa [#allocation3], 1
    %306 = vsyncpa [#allocation6], 1
    %307 = vsyncpa [#allocation9], 1
    %308 = vsyncpa [#allocation4], 1

</llo_original>
